<compile_context>
chip_gen: v6e
topology: v6e:2x2x1
jax: 0.10.0
libtpu: 0.0.40
codegen_flags: <defaults>
</compile_context>

<pallas_src>
import functools

import jax
import jax.numpy as jnp
from jax.experimental import pallas as pl
from jax.experimental.pallas import tpu as pltpu

_LANES = 128
_MAX_BLOCK_ROWS = 512  # 512*128*4B = 256 KiB/tile; 3 inputs, double-buffered ~1.5 MiB


def _round_up(x, m):
    return ((x + m - 1) // m) * m


# --------------------------------------------------------------------------
# Smooth-L1 localization loss (FRLocLoss)
# --------------------------------------------------------------------------
def _frloc_loss_kernel(pred_ref, gt_ref, labels_ref, loss_ref,
                       loss_acc, cnt_acc, *, sigma2, inv_c):
    i = pl.program_id(0)

    @pl.when(i == 0)
    def _init():
        loss_acc[...] = jnp.zeros_like(loss_acc)
        cnt_acc[...] = jnp.zeros_like(cnt_acc)

    inv_sigma2 = 1.0 / sigma2          # compile-time constants (hoisted)
    half_sigma2 = 0.5 * sigma2
    half_inv_sigma2 = 0.5 * inv_sigma2

    pred = pred_ref[...]               # (T, 128) f32, lane-dense
    gt = gt_ref[...]                   # (T, 128) f32
    labels = labels_ref[...]           # (T, 128) f32 (label repeated per coord)

    in_w = jnp.where(labels > 0.0, 1.0, 0.0)
    diff = in_w * (pred - gt)
    abs_diff = jnp.abs(diff)
    y = jnp.where(abs_diff < inv_sigma2,
                  half_sigma2 * diff * diff,
                  abs_diff - half_inv_sigma2)

    loss_acc[...] += jnp.sum(y, keepdims=True)
    cnt_acc[...] += jnp.sum(jnp.where(labels >= 0.0, 1.0, 0.0), keepdims=True)

    @pl.when(i == pl.num_programs(0) - 1)
    def _fin():
        count = cnt_acc[...] * inv_c   # labels were repeated C times
        loss_ref[...] = loss_acc[...] / jnp.maximum(count, 1e-9)


def frloc_loss(pred_locs, gt_locs, gt_labels, sigma):
    """JAX/Pallas equivalent of FRLocLoss.forward (sigma static)."""
    c = int(pred_locs.shape[-1])
    pred = pred_locs.reshape(-1).astype(jnp.float32)
    gt = gt_locs.reshape(-1).astype(jnp.float32)
    labels = jnp.repeat(gt_labels.reshape(-1).astype(jnp.float32), c)

    n = pred.shape[0]
    rows = max(-(-n // _LANES), 1)
    block_rows = min(_MAX_BLOCK_ROWS, _round_up(rows, 8))
    total_rows = _round_up(rows, block_rows)
    pad = total_rows * _LANES - n

    pred = jnp.pad(pred, (0, pad)).reshape(total_rows, _LANES)
    gt = jnp.pad(gt, (0, pad)).reshape(total_rows, _LANES)
    labels = jnp.pad(labels, (0, pad), constant_values=-1.0).reshape(total_rows, _LANES)

    kernel = functools.partial(_frloc_loss_kernel,
                               sigma2=float(sigma) ** 2, inv_c=1.0 / float(c))
    out = pl.pallas_call(
        kernel,
        out_shape=jax.ShapeDtypeStruct((1, 1), jnp.float32),
        grid=(total_rows // block_rows,),
        in_specs=[
            pl.BlockSpec((block_rows, _LANES), lambda i: (i, 0)),
            pl.BlockSpec((block_rows, _LANES), lambda i: (i, 0)),
            pl.BlockSpec((block_rows, _LANES), lambda i: (i, 0)),
        ],
        out_specs=pl.BlockSpec((1, 1), lambda i: (0, 0)),
        scratch_shapes=[pltpu.VMEM((1, 1), jnp.float32),
                        pltpu.VMEM((1, 1), jnp.float32)],
        compiler_params=pltpu.CompilerParams(
            dimension_semantics=("arbitrary",),
            vmem_limit_bytes=64 * 1024 * 1024),
    )(pred, gt, labels)
    return out[0, 0]


# --------------------------------------------------------------------------
# Cross-entropy with ignore_index=-1 (mean over non-ignored rows)
# --------------------------------------------------------------------------
def _ce_kernel(scores_ref, labels_ref, loss_ref, loss_acc, cnt_acc):
    i = pl.program_id(0)

    @pl.when(i == 0)
    def _init():
        loss_acc[...] = jnp.zeros_like(loss_acc)
        cnt_acc[...] = jnp.zeros_like(cnt_acc)

    s = scores_ref[...]                          # (T, 128) f32, pad cols = -1e30
    lab = labels_ref[...]                        # (T, 1) int32, pad rows = -1

    row_max = jnp.max(s, axis=-1, keepdims=True)
    lse = row_max + jnp.log(jnp.sum(jnp.exp(s - row_max), axis=-1, keepdims=True))
    lane = jax.lax.broadcasted_iota(jnp.int32, s.shape, 1)
    picked = jnp.sum(jnp.where(lane == lab, s, 0.0), axis=-1, keepdims=True)
    valid = (lab >= 0).astype(jnp.float32)

    loss_acc[...] += jnp.sum(valid * (lse - picked), keepdims=True)
    cnt_acc[...] += jnp.sum(valid, keepdims=True)

    @pl.when(i == pl.num_programs(0) - 1)
    def _fin():
        loss_ref[...] = loss_acc[...] / cnt_acc[...]


def cross_entropy_ignore(scores, labels):
    """F.cross_entropy(scores, labels, ignore_index=-1), reduction='mean'."""
    n, k = scores.shape
    assert k <= _LANES, "class dim must fit in one 128-lane tile"
    s = scores.astype(jnp.float32)
    lab = labels.reshape(-1, 1).astype(jnp.int32)

    rows = max(n, 1)
    block_rows = min(_MAX_BLOCK_ROWS, _round_up(rows, 8))
    total_rows = _round_up(rows, block_rows)

    s = jnp.pad(s, ((0, total_rows - n), (0, _LANES - k)), constant_values=-1e30)
    lab = jnp.pad(lab, ((0, total_rows - n), (0, 0)), constant_values=-1)

    out = pl.pallas_call(
        _ce_kernel,
        out_shape=jax.ShapeDtypeStruct((1, 1), jnp.float32),
        grid=(total_rows // block_rows,),
        in_specs=[
            pl.BlockSpec((block_rows, _LANES), lambda i: (i, 0)),
            pl.BlockSpec((block_rows, 1), lambda i: (i, 0)),
        ],
        out_specs=pl.BlockSpec((1, 1), lambda i: (0, 0)),
        scratch_shapes=[pltpu.VMEM((1, 1), jnp.float32),
                        pltpu.VMEM((1, 1), jnp.float32)],
        compiler_params=pltpu.CompilerParams(
            dimension_semantics=("arbitrary",),
            vmem_limit_bytes=64 * 1024 * 1024),
    )(s, lab)
    return out[0, 0]


# --------------------------------------------------------------------------
# FRLoss.forward
# --------------------------------------------------------------------------
def fr_loss(output_list, target_list, rpn_sigma, roi_sigma, rpn_weight, roi_weight):
    pred_rpn_locs, pred_rpn_scores, pred_roi_cls_locs, pred_roi_scores = output_list
    gt_rpn_locs, gt_rpn_labels, gt_roi_cls_locs, gt_roi_labels = target_list

    gt_rpn_labels = gt_rpn_labels.reshape(-1)
    pred_rpn_scores = pred_rpn_scores.reshape(-1, 2)

    rpn_loc_loss = frloc_loss(pred_rpn_locs, gt_rpn_locs, gt_rpn_labels, rpn_sigma)
    rpn_cls_loss = cross_entropy_ignore(pred_rpn_scores, gt_rpn_labels)
    roi_loc_loss = frloc_loss(pred_roi_cls_locs, gt_roi_cls_locs, gt_roi_labels, roi_sigma)
    roi_cls_loss = cross_entropy_ignore(pred_roi_scores, gt_roi_labels)

    rpn_loss = (rpn_loc_loss + rpn_cls_loss) * rpn_weight
    roi_loss = (roi_loc_loss + roi_cls_loss) * roi_weight
    return rpn_loss + roi_loss


# --------------------------------------------------------------------------
# Pure-JAX reference (mirrors the PyTorch semantics) for sanity checking.
# --------------------------------------------------------------------------
def _frloc_loss_ref(pred_locs, gt_locs, gt_labels, sigma):
    c = pred_locs.shape[-1]
    x = pred_locs.reshape(-1, c).astype(jnp.float32)
    t = gt_locs.reshape(-1, c).astype(jnp.float32)
    labels = gt_labels.reshape(-1, 1)
    in_w = jnp.where(labels > 0, 1.0, 0.0)
    sigma2 = sigma ** 2
    diff = in_w * (x - t)
    abs_diff = jnp.abs(diff)
    flag = (abs_diff < 1.0 / sigma2).astype(jnp.float32)
    y = flag * (sigma2 / 2.0) * diff ** 2 + (1 - flag) * (abs_diff - 0.5 / sigma2)
    loss = jnp.sum(y)
    count = jnp.sum((gt_labels.reshape(-1) >= 0).astype(jnp.float32))
    return loss / jnp.maximum(count, 1e-9)


def _ce_ref(scores, labels):
    s = scores.astype(jnp.float32)
    valid = labels >= 0
    safe = jnp.where(valid, labels, 0)
    logz = jax.scipy.special.logsumexp(s, axis=-1)
    picked = jnp.take_along_axis(s, safe[:, None], axis=-1)[:, 0]
    per = jnp.where(valid, logz - picked, 0.0)
    return jnp.sum(per) / jnp.sum(valid.astype(jnp.float32))


def _fr_loss_ref(output_list, target_list, rpn_sigma, roi_sigma, rpn_w, roi_w):
    pred_rpn_locs, pred_rpn_scores, pred_roi_cls_locs, pred_roi_scores = output_list
    gt_rpn_locs, gt_rpn_labels, gt_roi_cls_locs, gt_roi_labels = target_list
    gt_rpn_labels = gt_rpn_labels.reshape(-1)
    pred_rpn_scores = pred_rpn_scores.reshape(-1, 2)
    rpn_loc = _frloc_loss_ref(pred_rpn_locs, gt_rpn_locs, gt_rpn_labels, rpn_sigma)
    rpn_cls = _ce_ref(pred_rpn_scores, gt_rpn_labels)
    roi_loc = _frloc_loss_ref(pred_roi_cls_locs, gt_roi_cls_locs, gt_roi_labels, roi_sigma)
    roi_cls = _ce_ref(pred_roi_scores, gt_roi_labels)
    return (rpn_loc + rpn_cls) * rpn_w + (roi_loc + roi_cls) * roi_w


if __name__ == "__main__":
    key = jax.random.PRNGKey(0)
    keys = jax.random.split(key, 8)

    batch, n_anchor, n_roi, n_class = 2, 32, 16, 8
    pred_rpn_locs = jax.random.normal(keys[0], (batch, n_anchor, 4), dtype=jnp.float32)
    gt_rpn_locs = jax.random.normal(keys[1], (batch, n_anchor, 4), dtype=jnp.float32)
    # rpn labels in {-1, 0, 1}: -1 = ignore, 0 = background, 1 = foreground
    gt_rpn_labels = jax.random.randint(keys[2], (batch, n_anchor), -1, 2, dtype=jnp.int32)
    pred_rpn_scores = jax.random.normal(keys[3], (batch, n_anchor, 2), dtype=jnp.float32)

    pred_roi_cls_locs = jax.random.normal(keys[4], (n_roi, 4), dtype=jnp.float32)
    gt_roi_cls_locs = jax.random.normal(keys[5], (n_roi, 4), dtype=jnp.float32)
    gt_roi_labels = jax.random.randint(keys[6], (n_roi,), -1, n_class, dtype=jnp.int32)
    pred_roi_scores = jax.random.normal(keys[7], (n_roi, n_class), dtype=jnp.float32)

    rpn_sigma, roi_sigma = 3.0, 1.0
    rpn_w, roi_w = 1.0, 1.0

    output_list = (pred_rpn_locs, pred_rpn_scores, pred_roi_cls_locs, pred_roi_scores)
    target_list = (gt_rpn_locs, gt_rpn_labels, gt_roi_cls_locs, gt_roi_labels)

    loss = fr_loss(output_list, target_list, rpn_sigma, roi_sigma, rpn_w, roi_w)
    loss = jax.block_until_ready(loss)

    ref = jax.block_until_ready(
        _fr_loss_ref(output_list, target_list, rpn_sigma, roi_sigma, rpn_w, roi_w))
    assert jnp.allclose(loss, ref, rtol=1e-5, atol=1e-5), (loss, ref)

    print("KERNEL_OK")
</pallas_src>

<mosaic_0001>
module attributes {stable_mosaic.version = 11 : i64} {
  func.func @_frloc_loss_kernel(%arg0: i32, %arg1: memref<8x128xf32, #tpu.memory_space<vmem>>, %arg2: memref<8x128xf32, #tpu.memory_space<vmem>>, %arg3: memref<8x128xf32, #tpu.memory_space<vmem>>, %arg4: memref<1x1xf32, #tpu.memory_space<vmem>>, %arg5: memref<1x1xf32, #tpu.memory_space<vmem>>, %arg6: memref<1x1xf32, #tpu.memory_space<vmem>>) attributes {dimension_semantics = [#tpu.dimension_semantics<arbitrary>], iteration_bounds = array<i64: 1>, scalar_prefetch = 0 : i64, scratch_operands = 2 : i64, tpu.core_type = #tpu.core_type<tc>, window_params = [{transform_indices = @transform_0, window_bounds = array<i64: 8, 128>}, {transform_indices = @transform_1, window_bounds = array<i64: 8, 128>}, {transform_indices = @transform_2, window_bounds = array<i64: 8, 128>}, {pipeline_mode = #tpu.pipeline_mode<synchronous>, transform_indices = @transform_3, window_bounds = array<i64: 1, 1>}]} {
    %c0_i32 = arith.constant 0 : i32
    %0 = arith.cmpi eq, %arg0, %c0_i32 : i32
    %1 = arith.extui %0 : i1 to i32
    %c0_i32_0 = arith.constant 0 : i32
    %2 = arith.cmpi ne, %1, %c0_i32_0 : i32
    scf.if %2 {
      %cst_26 = arith.constant 0.000000e+00 : f32
      %46 = vector.broadcast %cst_26 : f32 to vector<1x1xf32>
      %c0_27 = arith.constant 0 : index
      %c0_28 = arith.constant 0 : index
      %47 = vector.load %arg5[%c0_27, %c0_28] : memref<1x1xf32, #tpu.memory_space<vmem>>, vector<1x1xf32>
      tpu.vector_store %arg5[%c0_27, %c0_28], %46 {strides = array<i32>} : memref<1x1xf32, #tpu.memory_space<vmem>>, vector<1x1xf32>,
      %cst_29 = arith.constant 0.000000e+00 : f32
      %48 = vector.broadcast %cst_29 : f32 to vector<1x1xf32>
      %c0_30 = arith.constant 0 : index
      %c0_31 = arith.constant 0 : index
      %49 = vector.load %arg6[%c0_30, %c0_31] : memref<1x1xf32, #tpu.memory_space<vmem>>, vector<1x1xf32>
      tpu.vector_store %arg6[%c0_30, %c0_31], %48 {strides = array<i32>} : memref<1x1xf32, #tpu.memory_space<vmem>>, vector<1x1xf32>,
    } else {
    }
    %c0 = arith.constant 0 : index
    %c0_1 = arith.constant 0 : index
    %3 = vector.load %arg1[%c0, %c0_1] : memref<8x128xf32, #tpu.memory_space<vmem>>, vector<8x128xf32>
    %c0_2 = arith.constant 0 : index
    %c0_3 = arith.constant 0 : index
    %4 = vector.load %arg2[%c0_2, %c0_3] : memref<8x128xf32, #tpu.memory_space<vmem>>, vector<8x128xf32>
    %c0_4 = arith.constant 0 : index
    %c0_5 = arith.constant 0 : index
    %5 = vector.load %arg3[%c0_4, %c0_5] : memref<8x128xf32, #tpu.memory_space<vmem>>, vector<8x128xf32>
    %cst = arith.constant 0.000000e+00 : f32
    %6 = vector.broadcast %cst : f32 to vector<8x128xf32>
    %7 = arith.cmpf ogt, %5, %6 : vector<8x128xf32>
    %cst_6 = arith.constant 1.000000e+00 : f32
    %cst_7 = arith.constant 0.000000e+00 : f32
    %8 = vector.broadcast %cst_6 : f32 to vector<8x128xf32>
    %9 = vector.broadcast %cst_7 : f32 to vector<8x128xf32>
    %10 = arith.select %7, %8, %9 : vector<8x128xi1>, vector<8x128xf32>
    %11 = arith.subf %3, %4 : vector<8x128xf32>
    %12 = arith.mulf %10, %11 : vector<8x128xf32>
    %13 = math.absf %12 : vector<8x128xf32>
    %cst_8 = arith.constant 0.111111112 : f32
    %14 = vector.broadcast %cst_8 : f32 to vector<8x128xf32>
    %15 = arith.cmpf olt, %13, %14 : vector<8x128xf32>
    %cst_9 = arith.constant 4.500000e+00 : f32
    %16 = vector.broadcast %cst_9 : f32 to vector<8x128xf32>
    %17 = arith.mulf %16, %12 : vector<8x128xf32>
    %18 = arith.mulf %17, %12 : vector<8x128xf32>
    %cst_10 = arith.constant 0.055555556 : f32
    %19 = vector.broadcast %cst_10 : f32 to vector<8x128xf32>
    %20 = arith.subf %13, %19 : vector<8x128xf32>
    %21 = arith.select %15, %18, %20 : vector<8x128xi1>, vector<8x128xf32>
    %c0_11 = arith.constant 0 : index
    %c0_12 = arith.constant 0 : index
    %22 = vector.load %arg5[%c0_11, %c0_12] : memref<1x1xf32, #tpu.memory_space<vmem>>, vector<1x1xf32>
    %23 = vector.shape_cast %21 : vector<8x128xf32> to vector<1x8x128xf32>
    %cst_13 = arith.constant dense<0.000000e+00> : vector<1xf32>
    %24 = vector.multi_reduction <add>, %23, %cst_13 [1, 2] : vector<1x8x128xf32> to vector<1xf32>
    %25 = vector.shape_cast %24 : vector<1xf32> to vector<1x1x1xf32>
    %26 = vector.extract %25[0, 0, 0] : f32 from vector<1x1x1xf32>
    %27 = vector.broadcast %26 : f32 to vector<1x1xf32>
    %28 = arith.addf %22, %27 : vector<1x1xf32>
    %c0_14 = arith.constant 0 : index
    %c0_15 = arith.constant 0 : index
    %29 = vector.load %arg5[%c0_14, %c0_15] : memref<1x1xf32, #tpu.memory_space<vmem>>, vector<1x1xf32>
    tpu.vector_store %arg5[%c0_14, %c0_15], %28 {strides = array<i32>} : memref<1x1xf32, #tpu.memory_space<vmem>>, vector<1x1xf32>,
    %c0_16 = arith.constant 0 : index
    %c0_17 = arith.constant 0 : index
    %30 = vector.load %arg6[%c0_16, %c0_17] : memref<1x1xf32, #tpu.memory_space<vmem>>, vector<1x1xf32>
    %cst_18 = arith.constant 0.000000e+00 : f32
    %31 = vector.broadcast %cst_18 : f32 to vector<8x128xf32>
    %32 = arith.cmpf oge, %5, %31 : vector<8x128xf32>
    %cst_19 = arith.constant 1.000000e+00 : f32
    %cst_20 = arith.constant 0.000000e+00 : f32
    %33 = vector.broadcast %cst_19 : f32 to vector<8x128xf32>
    %34 = vector.broadcast %cst_20 : f32 to vector<8x128xf32>
    %35 = arith.select %32, %33, %34 : vector<8x128xi1>, vector<8x128xf32>
    %36 = vector.shape_cast %35 : vector<8x128xf32> to vector<1x8x128xf32>
    %cst_21 = arith.constant dense<0.000000e+00> : vector<1xf32>
    %37 = vector.multi_reduction <add>, %36, %cst_21 [1, 2] : vector<1x8x128xf32> to vector<1xf32>
    %38 = vector.shape_cast %37 : vector<1xf32> to vector<1x1x1xf32>
    %39 = vector.extract %38[0, 0, 0] : f32 from vector<1x1x1xf32>
    %40 = vector.broadcast %39 : f32 to vector<1x1xf32>
    %41 = arith.addf %30, %40 : vector<1x1xf32>
    %c0_22 = arith.constant 0 : index
    %c0_23 = arith.constant 0 : index
    %42 = vector.load %arg6[%c0_22, %c0_23] : memref<1x1xf32, #tpu.memory_space<vmem>>, vector<1x1xf32>
    tpu.vector_store %arg6[%c0_22, %c0_23], %41 {strides = array<i32>} : memref<1x1xf32, #tpu.memory_space<vmem>>, vector<1x1xf32>,
    %c0_i32_24 = arith.constant 0 : i32
    %43 = arith.cmpi eq, %arg0, %c0_i32_24 : i32
    %44 = arith.extui %43 : i1 to i32
    %c0_i32_25 = arith.constant 0 : i32
    %45 = arith.cmpi ne, %44, %c0_i32_25 : i32
    scf.if %45 {
      %c0_26 = arith.constant 0 : index
      %c0_27 = arith.constant 0 : index
      %46 = vector.load %arg6[%c0_26, %c0_27] : memref<1x1xf32, #tpu.memory_space<vmem>>, vector<1x1xf32>
      %cst_28 = arith.constant 2.500000e-01 : f32
      %47 = vector.broadcast %cst_28 : f32 to vector<1x1xf32>
      %48 = arith.mulf %46, %47 : vector<1x1xf32>
      %c0_29 = arith.constant 0 : index
      %c0_30 = arith.constant 0 : index
      %49 = vector.load %arg5[%c0_29, %c0_30] : memref<1x1xf32, #tpu.memory_space<vmem>>, vector<1x1xf32>
      %cst_31 = arith.constant 9.99999971E-10 : f32
      %50 = vector.broadcast %cst_31 : f32 to vector<1x1xf32>
      %51 = arith.maximumf %48, %50 : vector<1x1xf32>
      %52 = arith.divf %49, %51 : vector<1x1xf32>
      %c0_32 = arith.constant 0 : index
      %c0_33 = arith.constant 0 : index
      %53 = vector.load %arg4[%c0_32, %c0_33] : memref<1x1xf32, #tpu.memory_space<vmem>>, vector<1x1xf32>
      tpu.vector_store %arg4[%c0_32, %c0_33], %52 {strides = array<i32>} : memref<1x1xf32, #tpu.memory_space<vmem>>, vector<1x1xf32>,
    } else {
    }
    return
  }
  func.func @transform_0(%arg0: i32) -> (i32, i32) {
    %c0_i32 = arith.constant 0 : i32
    %c0_i32_0 = arith.constant 0 : i32
    return %arg0, %c0_i32 : i32, i32
  }
  func.func @transform_1(%arg0: i32) -> (i32, i32) {
    %c0_i32 = arith.constant 0 : i32
    %c0_i32_0 = arith.constant 0 : i32
    return %arg0, %c0_i32 : i32, i32
  }
  func.func @transform_2(%arg0: i32) -> (i32, i32) {
    %c0_i32 = arith.constant 0 : i32
    %c0_i32_0 = arith.constant 0 : i32
    return %arg0, %c0_i32 : i32, i32
  }
  func.func @transform_3(%arg0: i32) -> (i32, i32) {
    %c0_i32 = arith.constant 0 : i32
    %c0_i32_0 = arith.constant 0 : i32
    %c0_i32_1 = arith.constant 0 : i32
    return %c0_i32, %c0_i32_0 : i32, i32
  }
}

</mosaic_0001>

<llo_original>
// kernel: tpu_custom_call.1
$region0: #{tpu_custom_call.1}
  #allocation0 [shape = 'u32[]', space=smem, size = 0x4, offset = 0x4, fixed_abs, tag = 'smem constant byte address 0x4 - core index']
  #allocation1 [shape = 'u32[144,128]{1,0:T(1,128)}', space=vmem, size = 0x12000, scoped, tag = 'internal scratch']
  #allocation2 [shape = 'f32[1,1]{1,0:T(1,128)}', space=vmem, size = 0x200, scoped, tag = 'scratch operand']
  #allocation3 [shape = 'f32[1,1]{1,0:T(1,128)}', space=vmem, size = 0x200, scoped, tag = 'scratch operand']
  %s0 = inlined_call_operand.hbm [shape: f32[8,128], index: 0, kind: input, shape index: {}]
  %s1 = inlined_call_operand.hbm [shape: f32[8,128], index: 1, kind: input, shape index: {}]
  %s2 = inlined_call_operand.hbm [shape: f32[8,128], index: 2, kind: input, shape index: {}]
  %s3 = inlined_call_operand.hbm [shape: f32[1,1], index: 3, kind: output, shape index: {}]
  %s4 = sld [smem:[#allocation0]]
  $region42: #{tpu_custom_call.1} parent=0
    _
  %s6 = ssub.s32 1, %s4
  %s7 = scalar_select 0, %s6, %s4
  $region1: #{tpu_custom_call.1} parent=0
    #allocation4 [shape = 'u8[4096]{0}', space=vmem, size = 0x1000, scoped, tag = 'input window, operand 0, single buffered']
    #allocation5 [shape = 's32[1]{0}', space=sflag, size = 0x4, scoped, tag = 'scoped memory for tpu_custom_call.1']
    #allocation6 [shape = 's32[1]{0}', space=sflag, size = 0x4, scoped, tag = 'scoped memory for tpu_custom_call.1']
    #allocation7 [shape = 'u8[4096]{0}', space=vmem, size = 0x1000, scoped, tag = 'input window, operand 1, single buffered']
    #allocation8 [shape = 's32[1]{0}', space=sflag, size = 0x4, scoped, tag = 'scoped memory for tpu_custom_call.1']
    #allocation9 [shape = 'u8[4096]{0}', space=vmem, size = 0x1000, scoped, tag = 'input window, operand 2, single buffered']
    #allocation10 [shape = 'u8[512]{0}', space=vmem, size = 0x400, scoped, tag = 'output window, operand 0, single buffered']
    %8 = vsyncpa [#allocation5], 0
    %9 = vsyncpa [#allocation8], 0
    %10 = vsyncpa [#allocation6], 0
    // Predicated region
    $region2: #{tpu_custom_call.1} parent=1 // pred_check
      _
    $region3: #{tpu_custom_call.1} parent=1 // pred_check_branch
      %12 = sbr.rel (0) target = $region5
    $region4: #{tpu_custom_call.1} parent=1 // pred_region
      %s14 = ssub.s32 128, 128
      %15 = vsyncadd [#allocation5], %s14
      %s17 = sshll.u32 [#allocation4], 4
      %s18 = int_to_ptr.vmem [resolvable:$true] %s17
      %20 = dma.hbm_to_vmem [thread:$0]  %s0, 128, %s18, [#allocation5]
    $region5: #{tpu_custom_call.1} parent=1 // pred_fallthru
      _
    // Predicated region
    $region6: #{tpu_custom_call.1} parent=1 // pred_check
      _
    $region7: #{tpu_custom_call.1} parent=1 // pred_check_branch
      %22 = sbr.rel (0) target = $region9
    $region8: #{tpu_custom_call.1} parent=1 // pred_region
      %s24 = ssub.s32 128, 128
      %25 = vsyncadd [#allocation8], %s24
      %s27 = sshll.u32 [#allocation7], 4
      %s28 = int_to_ptr.vmem [resolvable:$true] %s27
      %30 = dma.hbm_to_vmem [thread:$0]  %s1, 128, %s28, [#allocation8]
    $region9: #{tpu_custom_call.1} parent=1 // pred_fallthru
      _
    // Predicated region
    $region10: #{tpu_custom_call.1} parent=1 // pred_check
      _
    $region11: #{tpu_custom_call.1} parent=1 // pred_check_branch
      %32 = sbr.rel (0) target = $region13
    $region12: #{tpu_custom_call.1} parent=1 // pred_region
      %s34 = ssub.s32 128, 128
      %35 = vsyncadd [#allocation8], %s34
      %s37 = sshll.u32 [#allocation9], 4
      %s38 = int_to_ptr.vmem [resolvable:$true] %s37
      %40 = dma.hbm_to_vmem [thread:$0]  %s2, 128, %s38, [#allocation8]
    $region13: #{tpu_custom_call.1} parent=1 // pred_fallthru
      _
    // Predicated region
    $region14: #{tpu_custom_call.1} parent=1 // pred_check
      _
    $region15: #{tpu_custom_call.1} parent=1 // pred_check_branch
      %42 = sbr.rel (0) target = $region17
    $region16: #{tpu_custom_call.1} parent=1 // pred_region
      %43 = dma.done [#allocation5], 128
    $region17: #{tpu_custom_call.1} parent=1 // pred_fallthru
      _
    // Predicated region
    $region18: #{tpu_custom_call.1} parent=1 // pred_check
      _
    $region19: #{tpu_custom_call.1} parent=1 // pred_check_branch
      %45 = sbr.rel (0) target = $region21
    $region20: #{tpu_custom_call.1} parent=1 // pred_region
      %46 = dma.done [#allocation8], 128
    $region21: #{tpu_custom_call.1} parent=1 // pred_fallthru
      _
    // Predicated region
    $region22: #{tpu_custom_call.1} parent=1 // pred_check
      _
    $region23: #{tpu_custom_call.1} parent=1 // pred_check_branch
      %48 = sbr.rel (0) target = $region25
    $region24: #{tpu_custom_call.1} parent=1 // pred_region
      %49 = dma.done [#allocation8], 128
    $region25: #{tpu_custom_call.1} parent=1 // pred_fallthru
      _
    %p50 = scmp.eq.s32.totalorder 0, 0
    // Predicated region
    $region26: #{tpu_custom_call.1} parent=1 // pred_check
      %p51 = pneg %p50
    $region27: #{tpu_custom_call.1} parent=1 // pred_check_branch
      %53 = sbr.rel (%p51) target = $region29
    $region28: #{tpu_custom_call.1} parent=1 // pred_region
      %vm54 = vcmask 0
      %55 = vst.msk [vmem:[#allocation2] sm:$0x1] %vm54, 0.0
      %56 = vst.msk [vmem:[#allocation3] sm:$0x1] %vm54, 0.0
    $region29: #{tpu_custom_call.1} parent=1 // pred_fallthru
      _
    %v57 = vld [vmem:[#allocation4] sm:$0xff]
    %v58 = vld [vmem:[#allocation7] sm:$0xff]
    %v59 = vld [vmem:[#allocation9] sm:$0xff]
    %vm60 = vcmp.gt.f32.partialorder %v59, 0.0
    %v61 = vsel %vm60, 1.0, 0.0
    %v62 = vsub.f32 %v57, %v58
    %v63 = vmul.f32 %v61, %v62
    %v64 = vand.u32 2147483647, %v63
    %vm65 = vcmp.lt.f32.partialorder %v64, 0.11111111
    %v66 = vmul.f32 %v63, 4.5
    %v67 = vmul.f32 %v66, %v63
    %v68 = vsub.f32 %v64, 0.055555556
    %v69 = vsel %vm65, %v67, %v68
    %v70 = vld [vmem:[#allocation2] sm:$0x1]
    %71 = vadd.xlane.f32.xlu0 %v69
    %v72 = vpop.xlane.xlu0 %71
    %v73 = vrot.slane %v72, 4
    %v74 = vadd.f32 %v72, %v73
    %v75 = vrot.slane %v74, 2
    %v76 = vadd.f32 %v74, %v75
    %v77 = vrot.slane %v76, 1
    %v78 = vadd.f32 %v76, %v77
    %s79 = vtos %v78
    %v80 = vstv %s79
    %v81 = vadd.f32 %v70, %v80
    %vm82 = vcmask 0
    %83 = vst.msk [vmem:[#allocation2] sm:$0x1] %vm82, %v81
    %v84 = vld [vmem:[#allocation3] sm:$0x1]
    %vm85 = vcmp.ge.f32.partialorder %v59, 0.0
    %v86 = vsel %vm85, 1.0, 0.0
    %87 = vadd.xlane.f32.xlu0 %v86
    %v88 = vpop.xlane.xlu0 %87
    %v89 = vrot.slane %v88, 4
    %v90 = vadd.f32 %v88, %v89
    %v91 = vrot.slane %v90, 2
    %v92 = vadd.f32 %v90, %v91
    %v93 = vrot.slane %v92, 1
    %v94 = vadd.f32 %v92, %v93
    %s95 = vtos %v94
    %v96 = vstv %s95
    %v97 = vadd.f32 %v84, %v96
    %98 = vst.msk [vmem:[#allocation3] sm:$0x1] %vm82, %v97
    // Predicated region
    $region30: #{tpu_custom_call.1} parent=1 // pred_check
      %p99 = pneg %p50
    $region31: #{tpu_custom_call.1} parent=1 // pred_check_branch
      %101 = sbr.rel (%p99) target = $region33
    $region32: #{tpu_custom_call.1} parent=1 // pred_region
      %v102 = vld [vmem:[#allocation3] sm:$0x1]
      %v103 = vmul.f32 %v102, 0.25
      %v104 = vld [vmem:[#allocation2] sm:$0x1]
      %v105 = vmax.f32 %v103, 1e-09
      %v106 = vrcp.pop %v105
      %v107 = vmul.f32 %v104, %v106
      %108 = vst.msk [vmem:[#allocation10] sm:$0x1] %vm82, %v107
    $region33: #{tpu_custom_call.1} parent=1 // pred_fallthru
      _
    // Predicated region
    $region34: #{tpu_custom_call.1} parent=1 // pred_check
      _
    $region35: #{tpu_custom_call.1} parent=1 // pred_check_branch
      %110 = sbr.rel (0) target = $region37
    $region36: #{tpu_custom_call.1} parent=1 // pred_region
      %s112 = ssub.s32 16, 16
      %113 = vsyncadd [#allocation6], %s112
      %s115 = sshll.u32 [#allocation10], 4
      %s116 = int_to_ptr.vmem [resolvable:$true] %s115
      %118 = dma.vmem_to_hbm [thread:$0]  %s116, 16, %s3, [#allocation6]
    $region37: #{tpu_custom_call.1} parent=1 // pred_fallthru
      _
    // Predicated region
    $region38: #{tpu_custom_call.1} parent=1 // pred_check
      _
    $region39: #{tpu_custom_call.1} parent=1 // pred_check_branch
      %120 = sbr.rel (0) target = $region41
    $region40: #{tpu_custom_call.1} parent=1 // pred_region
      %121 = dma.done [#allocation6], 16
    $region41: #{tpu_custom_call.1} parent=1 // pred_fallthru
      _
    %122 = vsyncpa [#allocation5], 1
    %123 = vsyncpa [#allocation8], 1
    %124 = vsyncpa [#allocation6], 1

</llo_original>
